<compile_context>
chip_gen: v5e
topology: v5e:2x2
jax: 0.10.0
libtpu: 0.0.40
codegen_flags: <defaults>
</compile_context>

<pallas_src>
import jax
import jax.numpy as jnp
from jax import lax
from jax.experimental import pallas as pl
from jax.experimental.pallas import tpu as pltpu

DIVISOR = 10.0
_INV_SQRT2 = 0.7071067811865475  # 1/sqrt(2)


def _round_up(x, m):
    return ((x + m - 1) // m) * m


# ---------------------------------------------------------------------------
# Kernels
# ---------------------------------------------------------------------------
def _fused_kernel(x_ref, w_ref, b_ref, o_ref):
    """Single K step: matmul + bias + divide + exact GELU, no accumulator."""
    acc = jnp.dot(x_ref[...], w_ref[...], preferred_element_type=jnp.float32)
    acc = (acc + b_ref[...]) * (1.0 / DIVISOR)
    o_ref[...] = (0.5 * acc * (1.0 + lax.erf(acc * _INV_SQRT2))).astype(o_ref.dtype)


def _ksplit_kernel(x_ref, w_ref, b_ref, o_ref, acc_ref):
    """K-reduction path (only used when K > tk)."""
    k = pl.program_id(2)

    @pl.when(k == 0)
    def _():
        acc_ref[...] = jnp.zeros_like(acc_ref)

    acc_ref[...] += jnp.dot(x_ref[...], w_ref[...], preferred_element_type=jnp.float32)

    @pl.when(k == pl.num_programs(2) - 1)
    def _():
        acc = (acc_ref[...] + b_ref[...]) * (1.0 / DIVISOR)
        o_ref[...] = (0.5 * acc * (1.0 + lax.erf(acc * _INV_SQRT2))).astype(o_ref.dtype)


# ---------------------------------------------------------------------------
# Tiling heuristics & parameter preparation (init-time)
# ---------------------------------------------------------------------------
def _choose_kn_tiles(K, N, tk=None, tn=None):
    if tk is None:
        tk = min(_round_up(K, 128), 2048)       # K=512 -> single K step
    if tn is None:
        cap = min(_round_up(N, 128), 512)
        tn = cap
        # Keep >= 4 N-blocks when possible: feeds both v7x TensorCores and gives
        # the v5e/v6e pipeline a steady state instead of one exposed weight DMA.
        if (_round_up(N, tn) // tn) < 4:
            for cand in (256, 128):
                if cand <= cap:
                    tn = cand
                    if (_round_up(N, tn) // tn) >= 4:
                        break
    return tk, tn


def prepare_linear_params(weight, bias, *, tk, tn, param_dtype=jnp.float32):
    """Transpose/pad the static linear parameters ONCE at init time.

    weight: (N, K) as in nn.Linear; bias: (N,).
    Returns (w_t_padded [Kp, Np], bias_padded [1, Np] f32).
    """
    N, K = weight.shape
    w_t = jnp.asarray(weight).T.astype(param_dtype)          # (K, N)
    b2d = jnp.asarray(bias).reshape(1, N).astype(jnp.float32)
    Kp, Np = _round_up(K, tk), _round_up(N, tn)
    if (Kp, Np) != (K, N):
        w_t = jnp.pad(w_t, ((0, Kp - K), (0, Np - N)))
    if Np != N:
        b2d = jnp.pad(b2d, ((0, 0), (0, Np - N)))
    return w_t, b2d


# ---------------------------------------------------------------------------
# Hot path
# ---------------------------------------------------------------------------
def linear_div_gelu_prepared(x, w_t_p, b2d_p, n_out, *, tk, tn, tm=None):
    """x: (M, K) f32.  w_t_p: (Kp, Np) pre-padded weight.  b2d_p: (1, Np) f32."""
    M, K = x.shape
    Kp, Np = w_t_p.shape
    assert Kp >= K and Kp % tk == 0 and Np % tn == 0
    out_dtype = jnp.float32

    if tm is None:
        tm = min(_round_up(M, 8), 512)
    Mp = _round_up(M, tm)

    xp = x
    if w_t_p.dtype == jnp.bfloat16 and xp.dtype != jnp.bfloat16:
        xp = xp.astype(jnp.bfloat16)            # bf16 at the HBM boundary
    if (Mp, Kp) != (M, K):
        xp = jnp.pad(xp, ((0, Mp - M), (0, Kp - K)))

    n_k = Kp // tk
    grid_mn = (Mp // tm, Np // tn)

    # Scoped-VMEM budget from the actual (double-buffered) tile footprint.
    tile_bytes = (2 * (tm * tk * xp.dtype.itemsize
                       + tk * tn * w_t_p.dtype.itemsize
                       + tn * 4)
                  + 2 * tm * tn * jnp.dtype(out_dtype).itemsize)
    if n_k > 1:
        tile_bytes += tm * tn * 4
    vmem_limit = min(max(int(tile_bytes * 1.5), 16 * 1024 * 1024), 40 * 1024 * 1024)

    if n_k == 1:
        out = pl.pallas_call(
            _fused_kernel,
            out_shape=jax.ShapeDtypeStruct((Mp, Np), out_dtype),
            grid_spec=pltpu.PrefetchScalarGridSpec(
                num_scalar_prefetch=0,
                grid=grid_mn,
                in_specs=[
                    pl.BlockSpec((tm, tk), lambda i, j: (i, 0)),
                    pl.BlockSpec((tk, tn), lambda i, j: (0, j)),
                    pl.BlockSpec((1, tn), lambda i, j: (0, j)),
                ],
                out_specs=pl.BlockSpec((tm, tn), lambda i, j: (i, j)),
            ),
            compiler_params=pltpu.CompilerParams(
                dimension_semantics=("parallel", "parallel"),
                vmem_limit_bytes=vmem_limit,
            ),
        )(xp, w_t_p, b2d_p)
    else:
        out = pl.pallas_call(
            _ksplit_kernel,
            out_shape=jax.ShapeDtypeStruct((Mp, Np), out_dtype),
            grid_spec=pltpu.PrefetchScalarGridSpec(
                num_scalar_prefetch=0,
                grid=grid_mn + (n_k,),
                in_specs=[
                    pl.BlockSpec((tm, tk), lambda i, j, k: (i, k)),
                    pl.BlockSpec((tk, tn), lambda i, j, k: (k, j)),
                    pl.BlockSpec((1, tn), lambda i, j, k: (0, j)),
                ],
                out_specs=pl.BlockSpec((tm, tn), lambda i, j, k: (i, j)),
                scratch_shapes=[pltpu.VMEM((tm, tn), jnp.float32)],
            ),
            compiler_params=pltpu.CompilerParams(
                dimension_semantics=("parallel", "parallel", "arbitrary"),
                vmem_limit_bytes=vmem_limit,
            ),
        )(xp, w_t_p, b2d_p)

    if (Mp, Np) != (M, n_out):
        out = out[:M, :n_out]
    return out


def linear_div_gelu(x, weight, bias, *, tm=None, tk=None, tn=None,
                    param_dtype=jnp.float32):
    """Convenience wrapper. weight: (N, K) as in nn.Linear.

    For production, call prepare_linear_params once at init and
    linear_div_gelu_prepared on the hot path (parameter pad/cast is static).
    """
    N, K = weight.shape
    tk, tn = _choose_kn_tiles(K, N, tk=tk, tn=tn)
    w_t_p, b2d_p = prepare_linear_params(weight, bias, tk=tk, tn=tn,
                                         param_dtype=param_dtype)
    return linear_div_gelu_prepared(x, w_t_p, b2d_p, N, tk=tk, tn=tn, tm=tm)


# ---------------------------------------------------------------------------
# Reference & tests
# ---------------------------------------------------------------------------
def _reference(x, weight, bias):
    y = jnp.dot(x, weight.T, precision=lax.Precision.HIGHEST,
                preferred_element_type=jnp.float32) + bias
    y = y / DIVISOR
    return 0.5 * y * (1.0 + lax.erf(y * _INV_SQRT2))


if __name__ == "__main__":
    key = jax.random.PRNGKey(0)

    # --- case 1: module's sizes (batch=8, 512 -> 1024), init-prepared params ---
    batch, input_size, output_size = 8, 512, 1024
    kx, kw, kb, key = jax.random.split(key, 4)
    bound = 1.0 / jnp.sqrt(jnp.float32(input_size))
    weight = jax.random.uniform(kw, (output_size, input_size), jnp.float32, -bound, bound)
    bias = jax.random.uniform(kb, (output_size,), jnp.float32, -bound, bound)
    x = jax.random.normal(kx, (batch, input_size), jnp.float32)

    tk, tn = _choose_kn_tiles(input_size, output_size)
    w_t_p, b2d_p = prepare_linear_params(weight, bias, tk=tk, tn=tn)   # init-time
    out = jax.block_until_ready(
        linear_div_gelu_prepared(x, w_t_p, b2d_p, output_size, tk=tk, tn=tn))
    ref = _reference(x, weight, bias)
    assert out.shape == (batch, output_size)
    assert jnp.allclose(out, ref, atol=2e-5, rtol=2e-5), "mismatch (f32 fused path)"

    # --- case 2: ragged shapes (padding path) ---
    kx2, kw2, kb2, key = jax.random.split(key, 4)
    M2, K2, N2 = 5, 300, 200
    bound2 = 1.0 / jnp.sqrt(jnp.float32(K2))
    w2 = jax.random.uniform(kw2, (N2, K2), jnp.float32, -bound2, bound2)
    b2 = jax.random.uniform(kb2, (N2,), jnp.float32, -bound2, bound2)
    x2 = jax.random.normal(kx2, (M2, K2), jnp.float32)
    out2 = jax.block_until_ready(linear_div_gelu(x2, w2, b2))
    ref2 = _reference(x2, w2, b2)
    assert out2.shape == (M2, N2)
    assert jnp.allclose(out2, ref2, atol=2e-5, rtol=2e-5), "mismatch (ragged path)"

    # --- case 3: force the K-reduction kernel (tk override -> 4 K steps) ---
    out3 = jax.block_until_ready(linear_div_gelu(x, weight, bias, tk=128))
    assert jnp.allclose(out3, ref, atol=2e-5, rtol=2e-5), "mismatch (K-split path)"

    # --- case 4: bf16 weights at the HBM boundary (opt-in; looser tolerance) ---
    out4 = jax.block_until_ready(
        linear_div_gelu(x, weight, bias, param_dtype=jnp.bfloat16))
    assert out4.shape == (batch, output_size)
    assert jnp.allclose(out4, ref, atol=2e-2, rtol=2e-2), "mismatch (bf16 path)"

    print("KERNEL_OK")
</pallas_src>

<mosaic_0001>
module attributes {stable_mosaic.version = 11 : i64} {
  func.func @_fused_kernel(%arg0: i32, %arg1: i32, %arg2: memref<8x512xf32, #tpu.memory_space<vmem>>, %arg3: memref<512x256xf32, #tpu.memory_space<vmem>>, %arg4: memref<1x256xf32, #tpu.memory_space<vmem>>, %arg5: memref<8x256xf32, #tpu.memory_space<vmem>>) attributes {dimension_semantics = [#tpu.dimension_semantics<parallel>, #tpu.dimension_semantics<parallel>], iteration_bounds = array<i64: 1, 4>, scalar_prefetch = 0 : i64, scratch_operands = 0 : i64, tpu.core_type = #tpu.core_type<tc>, window_params = [{transform_indices = @transform_0, window_bounds = array<i64: 8, 512>}, {transform_indices = @transform_1, window_bounds = array<i64: 512, 256>}, {transform_indices = @transform_2, window_bounds = array<i64: 1, 256>}, {transform_indices = @transform_3, window_bounds = array<i64: 8, 256>}]} {
    %c0 = arith.constant 0 : index
    %c0_0 = arith.constant 0 : index
    %0 = vector.load %arg2[%c0, %c0_0] : memref<8x512xf32, #tpu.memory_space<vmem>>, vector<8x512xf32>
    %c0_1 = arith.constant 0 : index
    %c0_2 = arith.constant 0 : index
    %1 = vector.load %arg3[%c0_1, %c0_2] : memref<512x256xf32, #tpu.memory_space<vmem>>, vector<512x256xf32>
    %cst = arith.constant dense<0.000000e+00> : vector<8x256xf32>
    %2 = tpu.matmul %0, %1, %cst {dimension_numbers = #tpu.dot_dimension_numbers<[1], [0], [0], [1], [0, 0, 1, 1], [], []>} : vector<8x512xf32>, vector<512x256xf32>, vector<8x256xf32> -> vector<8x256xf32>
    %c0_3 = arith.constant 0 : index
    %c0_4 = arith.constant 0 : index
    %3 = vector.load %arg4[%c0_3, %c0_4] : memref<1x256xf32, #tpu.memory_space<vmem>>, vector<1x256xf32>
    %4 = vector.broadcast %3 : vector<1x256xf32> to vector<8x256xf32>
    %5 = arith.addf %2, %4 : vector<8x256xf32>
    %cst_5 = arith.constant 1.000000e-01 : f32
    %6 = vector.broadcast %cst_5 : f32 to vector<8x256xf32>
    %7 = arith.mulf %5, %6 : vector<8x256xf32>
    %cst_6 = arith.constant 5.000000e-01 : f32
    %8 = vector.broadcast %cst_6 : f32 to vector<8x256xf32>
    %9 = arith.mulf %8, %7 : vector<8x256xf32>
    %cst_7 = arith.constant 0.707106769 : f32
    %10 = vector.broadcast %cst_7 : f32 to vector<8x256xf32>
    %11 = arith.mulf %7, %10 : vector<8x256xf32>
    %12 = math.erf %11 : vector<8x256xf32>
    %cst_8 = arith.constant 1.000000e+00 : f32
    %13 = vector.broadcast %cst_8 : f32 to vector<8x256xf32>
    %14 = arith.addf %13, %12 : vector<8x256xf32>
    %15 = arith.mulf %9, %14 : vector<8x256xf32>
    %c0_9 = arith.constant 0 : index
    %c0_10 = arith.constant 0 : index
    %16 = vector.load %arg5[%c0_9, %c0_10] : memref<8x256xf32, #tpu.memory_space<vmem>>, vector<8x256xf32>
    tpu.vector_store %arg5[%c0_9, %c0_10], %15 {strides = array<i32>} : memref<8x256xf32, #tpu.memory_space<vmem>>, vector<8x256xf32>,
    return
  }
  func.func @transform_0(%arg0: i32, %arg1: i32) -> (i32, i32) {
    %c0_i32 = arith.constant 0 : i32
    %c0_i32_0 = arith.constant 0 : i32
    return %arg0, %c0_i32 : i32, i32
  }
  func.func @transform_1(%arg0: i32, %arg1: i32) -> (i32, i32) {
    %c0_i32 = arith.constant 0 : i32
    %c0_i32_0 = arith.constant 0 : i32
    return %c0_i32, %arg1 : i32, i32
  }
  func.func @transform_2(%arg0: i32, %arg1: i32) -> (i32, i32) {
    %c0_i32 = arith.constant 0 : i32
    %c0_i32_0 = arith.constant 0 : i32
    return %c0_i32, %arg1 : i32, i32
  }
  func.func @transform_3(%arg0: i32, %arg1: i32) -> (i32, i32) {
    %c0_i32 = arith.constant 0 : i32
    return %arg0, %arg1 : i32, i32
  }
}

</mosaic_0001>

<llo_original>
// kernel: tpu_custom_call.1
$region0: #{tpu_custom_call.1}
  #allocation0 [shape = 'u32[]', space=smem, size = 0x4, offset = 0x4, fixed_abs, tag = 'smem constant byte address 0x4 - core index']
  #allocation1 [shape = 'u32[72,128]{1,0:T(1,128)}', space=vmem, size = 0x9000, scoped, tag = 'internal scratch']
  %s0 = inlined_call_operand.hbm [shape: f32[8,512], index: 0, kind: input, shape index: {}]
  %s1 = inlined_call_operand.hbm [shape: f32[512,1024], index: 1, kind: input, shape index: {}]
  %s2 = inlined_call_operand.hbm [shape: f32[1,1024], index: 2, kind: input, shape index: {}]
  %s3 = inlined_call_operand.hbm [shape: f32[8,1024], index: 3, kind: output, shape index: {}]
  %s4 = sld [smem:[#allocation0]]
  $region57: #{tpu_custom_call.1} parent=0
    _
  %s6 = ssub.s32 1, %s4
  %s7 = scalar_select 0, %s6, %s4
  $region1: #{tpu_custom_call.1} parent=0
    #allocation2 [shape = 'u8[16384]{0}', space=vmem, size = 0x4000, scoped, tag = 'input window, operand 0, single buffered']
    #allocation3 [shape = 's32[2]{0}', space=sflag, size = 0x8, scoped, tag = 'scoped memory for tpu_custom_call.1']
    #allocation4 [shape = 's32[2]{0}', space=sflag, size = 0x8, scoped, tag = 'scoped memory for tpu_custom_call.1']
    #allocation5 [shape = 'u8[1048576]{0}', space=vmem, size = 0x100000, scoped, tag = 'input window, operand 1']
    #allocation6 [shape = 's32[2]{0}', space=sflag, size = 0x8, scoped, tag = 'scoped memory for tpu_custom_call.1']
    #allocation7 [shape = 'u8[2048]{0}', space=vmem, size = 0x800, scoped, tag = 'input window, operand 2']
    #allocation8 [shape = 'u8[16384]{0}', space=vmem, size = 0x4000, scoped, tag = 'output window, operand 0']
    %8 = vsyncpa [#allocation3], 0
    %9 = vsyncpa [#allocation6], 0
    %s10 = scalar_lea.sflag [#allocation6], 1
    %11 = vsyncpa %s10, 0
    %12 = vsyncpa [#allocation4], 0
    %s13 = scalar_lea.sflag [#allocation4], 1
    %14 = vsyncpa %s13, 0
    loop: start=0, step=1, limit=6
    $region2: #{tpu_custom_call.1} parent=1 // loop_pre_header
      _
    $region3: #{tpu_custom_call.1} parent=1 // loop_header
      %s16 = sphi 0, %s20
      %p17 = scmp.ge.s32.totalorder %s16, 6
      %s23 = sphi 0, %s35
      %s24 = sphi 0, %s31
      %s25 = sphi 0, %s23
      %s26 = sphi 0, %s24
      %s27 = sphi 0, %s25
      %s28 = sphi 0, %s26
      %s38 = sphi 0, %s40
      %s41 = sphi 0, %s38
      %s42 = sphi 0, %s41
      %s58 = sphi 0, %s42
      %s64 = sphi 0, %s66
      %s67 = sphi 0, %s64
      %s68 = sphi 0, %s67
      %s84 = sphi 0, %s68
      %s90 = sphi 0, %s92
      %s93 = sphi 0, %s90
      %s94 = sphi 0, %s93
      %s110 = sphi 0, %s94
      %s118 = sphi 0, %s120
      %s121 = sphi 0, %s118
      %s122 = sphi 0, %s121
      %s138 = sphi 0, %s122
    $region4: #{tpu_custom_call.1} parent=1 // loop_header_branch
      %19 = sbr.rel (%p17) target = $region8
    $region5: #{tpu_custom_call.1} parent=1 // loop_body
      %s21 = ssub.s32 %s16, 1
      %s22 = ssub.s32 %s16, 2
      %s29 = sadd.s32 1, %s24
      %p30 = scmp.ge.s32.totalorder %s29, 4
      %s31 = scalar_select %p30, 0, %s29
      %s32 = sadd.s32 1, %s23
      %s33 = scalar_select %p30, %s32, %s23
      %p34 = scmp.ge.s32.totalorder %s33, 1
      %s35 = scalar_select %p34, 0, %s33
      %s36 = ssub.s32 %s23, %s35
      %p37 = scmp.eq.s32.totalorder %s36, 0
      %s39 = sadd.s32 %s38, 1
      %s40 = scalar_select %p37, %s38, %s39
      %p43 = pneg %p37
      %p44 = scmp.eq.s32.totalorder %s16, 3
      %p45 = por %p43, %p44
      %p46 = scmp.ne.s32.totalorder %s38, %s41
      %p47 = scmp.eq.s32.totalorder %s16, 0
      %p48 = por %p46, %p47
      %p49 = scmp.ne.s32.totalorder %s38, %s41
      %p50 = scmp.eq.s32.totalorder %s21, 3
      %p51 = por %p49, %p50
      %p52 = scmp.ne.s32.totalorder %s41, %s42
      %p53 = scmp.eq.s32.totalorder %s21, 0
      %p54 = por %p52, %p53
      %p55 = scmp.ne.s32.totalorder %s41, %s42
      %p56 = scmp.eq.s32.totalorder %s22, 3
      %p57 = por %p55, %p56
      %p59 = scmp.ne.s32.totalorder %s42, %s58
      %p60 = scmp.eq.s32.totalorder %s22, 0
      %p61 = por %p59, %p60
      %s62 = ssub.s32 %s24, %s31
      %p63 = scmp.eq.s32.totalorder %s62, 0
      %s65 = sadd.s32 %s64, 1
      %s66 = scalar_select %p63, %s64, %s65
      %p69 = pneg %p63
      %p70 = scmp.eq.s32.totalorder %s16, 3
      %p71 = por %p69, %p70
      %p72 = scmp.ne.s32.totalorder %s64, %s67
      %p73 = scmp.eq.s32.totalorder %s16, 0
      %p74 = por %p72, %p73
      %p75 = scmp.ne.s32.totalorder %s64, %s67
      %p76 = scmp.eq.s32.totalorder %s21, 3
      %p77 = por %p75, %p76
      %p78 = scmp.ne.s32.totalorder %s67, %s68
      %p79 = scmp.eq.s32.totalorder %s21, 0
      %p80 = por %p78, %p79
      %p81 = scmp.ne.s32.totalorder %s67, %s68
      %p82 = scmp.eq.s32.totalorder %s22, 3
      %p83 = por %p81, %p82
      %p85 = scmp.ne.s32.totalorder %s68, %s84
      %p86 = scmp.eq.s32.totalorder %s22, 0
      %p87 = por %p85, %p86
      %s88 = ssub.s32 %s24, %s31
      %p89 = scmp.eq.s32.totalorder %s88, 0
      %s91 = sadd.s32 %s90, 1
      %s92 = scalar_select %p89, %s90, %s91
      %p95 = pneg %p89
      %p96 = scmp.eq.s32.totalorder %s16, 3
      %p97 = por %p95, %p96
      %p98 = scmp.ne.s32.totalorder %s90, %s93
      %p99 = scmp.eq.s32.totalorder %s16, 0
      %p100 = por %p98, %p99
      %p101 = scmp.ne.s32.totalorder %s90, %s93
      %p102 = scmp.eq.s32.totalorder %s21, 3
      %p103 = por %p101, %p102
      %p104 = scmp.ne.s32.totalorder %s93, %s94
      %p105 = scmp.eq.s32.totalorder %s21, 0
      %p106 = por %p104, %p105
      %p107 = scmp.ne.s32.totalorder %s93, %s94
      %p108 = scmp.eq.s32.totalorder %s22, 3
      %p109 = por %p107, %p108
      %p111 = scmp.ne.s32.totalorder %s94, %s110
      %p112 = scmp.eq.s32.totalorder %s22, 0
      %p113 = por %p111, %p112
      %s114 = ssub.s32 %s23, %s35
      %s115 = ssub.s32 %s24, %s31
      %s116 = sor.u32 %s114, %s115
      %p117 = scmp.eq.s32.totalorder %s116, 0
      %s119 = sadd.s32 %s118, 1
      %s120 = scalar_select %p117, %s118, %s119
      %p123 = pneg %p117
      %p124 = scmp.eq.s32.totalorder %s16, 3
      %p125 = por %p123, %p124
      %p126 = scmp.ne.s32.totalorder %s118, %s121
      %p127 = scmp.eq.s32.totalorder %s16, 0
      %p128 = por %p126, %p127
      %p129 = scmp.ne.s32.totalorder %s118, %s121
      %p130 = scmp.eq.s32.totalorder %s21, 3
      %p131 = por %p129, %p130
      %p132 = scmp.ne.s32.totalorder %s121, %s122
      %p133 = scmp.eq.s32.totalorder %s21, 0
      %p134 = por %p132, %p133
      %p135 = scmp.ne.s32.totalorder %s121, %s122
      %p136 = scmp.eq.s32.totalorder %s22, 3
      %p137 = por %p135, %p136
      %p139 = scmp.ne.s32.totalorder %s122, %s138
      %p140 = scmp.eq.s32.totalorder %s22, 0
      %p141 = por %p139, %p140
      %p142 = scmp.le.s32.totalorder 1, %s16
      %p143 = scmp.lt.s32.totalorder %s16, 5
      %p144 = pnand %p142, %p143
      %p145 = pneg %p144
      // Predicated region
      $region9: #{tpu_custom_call.1} parent=5 // pred_check
        _
      $region10: #{tpu_custom_call.1} parent=5 // pred_check_branch
        %147 = sbr.rel (%p144) target = $region12
      $region11: #{tpu_custom_call.1} parent=5 // pred_region
        %s148 = ssub.s32 %s16, 1
        // Predicated region
        $region13: #{tpu_custom_call.1} parent=11 // pred_check
          %p149 = pneg %p54
        $region14: #{tpu_custom_call.1} parent=11 // pred_check_branch
          %151 = sbr.rel (%p149) target = $region16
        $region15: #{tpu_custom_call.1} parent=11 // pred_region
          %153 = vsyncadd [#allocation3], 0
          %s154 = smul.addr %s25, 4
          %s155 = smul.addr %s154, 8
          %s156 = scalar_lea.hbm %s0, %s155
          %s158 = sshll.u32 %s156, 4
          %s159 = int_to_ptr.hbm [resolvable:$true] %s158
          %s160 = sshll.u32 [#allocation2], 4
          %s161 = int_to_ptr.vmem [resolvable:$true] %s160
          %163 = dma.hbm_to_vmem [thread:$0]  %s159, 512, %s161, [#allocation3]
        $region16: #{tpu_custom_call.1} parent=11 // pred_fallthru
          _
      $region12: #{tpu_custom_call.1} parent=5 // pred_fallthru
        _
      %p164 = scmp.lt.s32.totalorder %s16, 4
      // Predicated region
      $region17: #{tpu_custom_call.1} parent=5 // pred_check
        %p165 = pneg %p164
      $region18: #{tpu_custom_call.1} parent=5 // pred_check_branch
        %167 = sbr.rel (%p165) target = $region20
      $region19: #{tpu_custom_call.1} parent=5 // pred_region
        // Predicated region
        $region21: #{tpu_custom_call.1} parent=19 // pred_check
          %p168 = pneg %p74
        $region22: #{tpu_custom_call.1} parent=19 // pred_check_branch
          %170 = sbr.rel (%p168) target = $region24
        $region23: #{tpu_custom_call.1} parent=19 // pred_region
          %s171 = sand.u32 %s16, 1
          %s172 = scalar_lea.sflag [#allocation6], %s171
          %s173 = sand.u32 %s64, 1
          %s174 = smul.addr %s173, 1024
          %s175 = scalar_lea.vmem [#allocation5], %s174
          %s176 = smul.u32 2, %s24
          %178 = vsyncadd %s172, 0
          %s179 = smul.addr %s176, 8
          %s180 = scalar_lea.hbm %s1, %s179
          %s181 = sshll.u32 %s180, 4
          %s182 = int_to_ptr.hbm [resolvable:$true] %s181
          %s183 = sshll.u32 %s175, 4
          %s184 = int_to_ptr.vmem [resolvable:$true] %s183
          %189 = dma.hbm_to_vmem [thread:$0]  %s182, 16384, %s184, %s172, 1024, 256, 16
        $region24: #{tpu_custom_call.1} parent=19 // pred_fallthru
          _
        // Predicated region
        $region25: #{tpu_custom_call.1} parent=19 // pred_check
          %p190 = pneg %p100
        $region26: #{tpu_custom_call.1} parent=19 // pred_check_branch
          %192 = sbr.rel (%p190) target = $region28
        $region27: #{tpu_custom_call.1} parent=19 // pred_region
          %s193 = sand.u32 %s16, 1
          %s194 = scalar_lea.sflag [#allocation6], %s193
          %s195 = sand.u32 %s90, 1
          %s196 = smul.addr %s195, 2
          %s197 = scalar_lea.vmem [#allocation7], %s196
          %s198 = smul.u32 2, %s24
          %200 = vsyncadd %s194, 0
          %s201 = scalar_lea.hbm %s2, %s198
          %s203 = sshll.u32 %s201, 4
          %s204 = int_to_ptr.hbm [resolvable:$true] %s203
          %s205 = sshll.u32 %s197, 4
          %s206 = int_to_ptr.vmem [resolvable:$true] %s205
          %208 = dma.hbm_to_vmem [thread:$0]  %s204, 32, %s206, %s194
        $region28: #{tpu_custom_call.1} parent=19 // pred_fallthru
          _
      $region20: #{tpu_custom_call.1} parent=5 // pred_fallthru
        _
      %p209 = scmp.le.s32.totalorder 1, %s16
      %p210 = scmp.lt.s32.totalorder %s16, 5
      %p211 = pnand %p209, %p210
      %p212 = pneg %p211
      // Predicated region
      $region29: #{tpu_custom_call.1} parent=5 // pred_check
        _
      $region30: #{tpu_custom_call.1} parent=5 // pred_check_branch
        %214 = sbr.rel (%p211) target = $region32
      $region31: #{tpu_custom_call.1} parent=5 // pred_region
        %s215 = ssub.s32 %s16, 1
        // Predicated region
        $region33: #{tpu_custom_call.1} parent=31 // pred_check
          %p216 = pneg %p54
        $region34: #{tpu_custom_call.1} parent=31 // pred_check_branch
          %218 = sbr.rel (%p216) target = $region36
        $region35: #{tpu_custom_call.1} parent=31 // pred_region
          %220 = dma.done [#allocation3], 512
        $region36: #{tpu_custom_call.1} parent=31 // pred_fallthru
          _
        %s221 = sand.u32 %s21, 1
        %s222 = scalar_lea.sflag [#allocation6], %s221
        %s223 = sand.u32 %s67, 1
        %s224 = smul.addr %s223, 1024
        %s225 = scalar_lea.vmem [#allocation5], %s224
        // Predicated region
        $region37: #{tpu_custom_call.1} parent=31 // pred_check
          %p226 = pneg %p80
        $region38: #{tpu_custom_call.1} parent=31 // pred_check_branch
          %228 = sbr.rel (%p226) target = $region40
        $region39: #{tpu_custom_call.1} parent=31 // pred_region
          %230 = dma.done %s222, 16384
        $region40: #{tpu_custom_call.1} parent=31 // pred_fallthru
          _
        %s231 = sand.u32 %s21, 1
        %s232 = scalar_lea.sflag [#allocation6], %s231
        %s233 = sand.u32 %s93, 1
        %s234 = smul.addr %s233, 2
        %s235 = scalar_lea.vmem [#allocation7], %s234
        // Predicated region
        $region41: #{tpu_custom_call.1} parent=31 // pred_check
          %p236 = pneg %p106
        $region42: #{tpu_custom_call.1} parent=31 // pred_check_branch
          %238 = sbr.rel (%p236) target = $region44
        $region43: #{tpu_custom_call.1} parent=31 // pred_region
          %240 = dma.done %s232, 32
        $region44: #{tpu_custom_call.1} parent=31 // pred_fallthru
          _
        %p241 = pneg %p54
        %p242 = pneg %p51
        %s243 = sand.u32 %s21, 1
        %s244 = scalar_lea.sflag [#allocation6], %s243
        %s245 = sand.u32 %s67, 1
        %s246 = smul.addr %s245, 1024
        %s247 = scalar_lea.vmem [#allocation5], %s246
        %p248 = pneg %p80
        %p249 = pneg %p77
        %s250 = sand.u32 %s21, 1
        %s251 = scalar_lea.sflag [#allocation6], %s250
        %s252 = sand.u32 %s93, 1
        %s253 = smul.addr %s252, 2
        %s254 = scalar_lea.vmem [#allocation7], %s253
        %p255 = pneg %p106
        %p256 = pneg %p103
        %p257 = pneg %p134
        %p258 = pneg %p131
        %s259 = sand.u32 %s121, 1
        %s260 = scalar_lea.sflag [#allocation4], %s259
        %s261 = sand.u32 %s121, 1
        %s262 = smul.addr %s261, 16
        %s263 = scalar_lea.vmem [#allocation8], %s262
        %s264 = smul.u32 2, %s26
        %s265 = smul.u32 2, %s26
        %s266 = smul.u32 2, %s26
        %v267 = vld [vmem:[#allocation2] sm:$0xff]
        %v268 = vld [vmem:[#allocation2 + $0x8] sm:$0xff]
        %v269 = vld [vmem:[#allocation2 + $0x10] sm:$0xff]
        %v270 = vld [vmem:[#allocation2 + $0x18] sm:$0xff]
        %v271 = vld [vmem:[%s225] sm:$0xff]
        %v272 = vld [vmem:[%s225 + $0x8] sm:$0xff]
        %v273 = vld [vmem:[%s225 + $0x10] sm:$0xff]
        %v274 = vld [vmem:[%s225 + $0x18] sm:$0xff]
        %v275 = vld [vmem:[%s225 + $0x20] sm:$0xff]
        %v276 = vld [vmem:[%s225 + $0x28] sm:$0xff]
        %v277 = vld [vmem:[%s225 + $0x30] sm:$0xff]
        %v278 = vld [vmem:[%s225 + $0x38] sm:$0xff]
        %v279 = vld [vmem:[%s225 + $0x40] sm:$0xff]
        %v280 = vld [vmem:[%s225 + $0x48] sm:$0xff]
        %v281 = vld [vmem:[%s225 + $0x50] sm:$0xff]
        %v282 = vld [vmem:[%s225 + $0x58] sm:$0xff]
        %v283 = vld [vmem:[%s225 + $0x60] sm:$0xff]
        %v284 = vld [vmem:[%s225 + $0x68] sm:$0xff]
        %v285 = vld [vmem:[%s225 + $0x70] sm:$0xff]
        %v286 = vld [vmem:[%s225 + $0x78] sm:$0xff]
        %v287 = vld [vmem:[%s225 + $0x80] sm:$0xff]
        %v288 = vld [vmem:[%s225 + $0x88] sm:$0xff]
        %v289 = vld [vmem:[%s225 + $0x90] sm:$0xff]
        %v290 = vld [vmem:[%s225 + $0x98] sm:$0xff]
        %v291 = vld [vmem:[%s225 + $0xa0] sm:$0xff]
        %v292 = vld [vmem:[%s225 + $0xa8] sm:$0xff]
        %v293 = vld [vmem:[%s225 + $0xb0] sm:$0xff]
        %v294 = vld [vmem:[%s225 + $0xb8] sm:$0xff]
        %v295 = vld [vmem:[%s225 + $0xc0] sm:$0xff]
        %v296 = vld [vmem:[%s225 + $0xc8] sm:$0xff]
        %v297 = vld [vmem:[%s225 + $0xd0] sm:$0xff]
        %v298 = vld [vmem:[%s225 + $0xd8] sm:$0xff]
        %v299 = vld [vmem:[%s225 + $0xe0] sm:$0xff]
        %v300 = vld [vmem:[%s225 + $0xe8] sm:$0xff]
        %v301 = vld [vmem:[%s225 + $0xf0] sm:$0xff]
        %v302 = vld [vmem:[%s225 + $0xf8] sm:$0xff]
        %v303 = vld [vmem:[%s225 + $0x100] sm:$0xff]
        %v304 = vld [vmem:[%s225 + $0x108] sm:$0xff]
        %v305 = vld [vmem:[%s225 + $0x110] sm:$0xff]
        %v306 = vld [vmem:[%s225 + $0x118] sm:$0xff]
        %v307 = vld [vmem:[%s225 + $0x120] sm:$0xff]
        %v308 = vld [vmem:[%s225 + $0x128] sm:$0xff]
        %v309 = vld [vmem:[%s225 + $0x130] sm:$0xff]
        %v310 = vld [vmem:[%s225 + $0x138] sm:$0xff]
        %v311 = vld [vmem:[%s225 + $0x140] sm:$0xff]
        %v312 = vld [vmem:[%s225 + $0x148] sm:$0xff]
        %v313 = vld [vmem:[%s225 + $0x150] sm:$0xff]
        %v314 = vld [vmem:[%s225 + $0x158] sm:$0xff]
        %v315 = vld [vmem:[%s225 + $0x160] sm:$0xff]
        %v316 = vld [vmem:[%s225 + $0x168] sm:$0xff]
        %v317 = vld [vmem:[%s225 + $0x170] sm:$0xff]
        %v318 = vld [vmem:[%s225 + $0x178] sm:$0xff]
        %v319 = vld [vmem:[%s225 + $0x180] sm:$0xff]
        %v320 = vld [vmem:[%s225 + $0x188] sm:$0xff]
        %v321 = vld [vmem:[%s225 + $0x190] sm:$0xff]
        %v322 = vld [vmem:[%s225 + $0x198] sm:$0xff]
        %v323 = vld [vmem:[%s225 + $0x1a0] sm:$0xff]
        %v324 = vld [vmem:[%s225 + $0x1a8] sm:$0xff]
        %v325 = vld [vmem:[%s225 + $0x1b0] sm:$0xff]
        %v326 = vld [vmem:[%s225 + $0x1b8] sm:$0xff]
        %v327 = vld [vmem:[%s225 + $0x1c0] sm:$0xff]
        %v328 = vld [vmem:[%s225 + $0x1c8] sm:$0xff]
        %v329 = vld [vmem:[%s225 + $0x1d0] sm:$0xff]
        %v330 = vld [vmem:[%s225 + $0x1d8] sm:$0xff]
        %v331 = vld [vmem:[%s225 + $0x1e0] sm:$0xff]
        %v332 = vld [vmem:[%s225 + $0x1e8] sm:$0xff]
        %v333 = vld [vmem:[%s225 + $0x1f0] sm:$0xff]
        %v334 = vld [vmem:[%s225 + $0x1f8] sm:$0xff]
        %v335 = vld [vmem:[%s225 + $0x200] sm:$0xff]
        %v336 = vld [vmem:[%s225 + $0x208] sm:$0xff]
        %v337 = vld [vmem:[%s225 + $0x210] sm:$0xff]
        %v338 = vld [vmem:[%s225 + $0x218] sm:$0xff]
        %v339 = vld [vmem:[%s225 + $0x220] sm:$0xff]
        %v340 = vld [vmem:[%s225 + $0x228] sm:$0xff]
        %v341 = vld [vmem:[%s225 + $0x230] sm:$0xff]
        %v342 = vld [vmem:[%s225 + $0x238] sm:$0xff]
        %v343 = vld [vmem:[%s225 + $0x240] sm:$0xff]
        %v344 = vld [vmem:[%s225 + $0x248] sm:$0xff]
        %v345 = vld [vmem:[%s225 + $0x250] sm:$0xff]
        %v346 = vld [vmem:[%s225 + $0x258] sm:$0xff]
        %v347 = vld [vmem:[%s225 + $0x260] sm:$0xff]
        %v348 = vld [vmem:[%s225 + $0x268] sm:$0xff]
        %v349 = vld [vmem:[%s225 + $0x270] sm:$0xff]
        %v350 = vld [vmem:[%s225 + $0x278] sm:$0xff]
        %v351 = vld [vmem:[%s225 + $0x280] sm:$0xff]
        %v352 = vld [vmem:[%s225 + $0x288] sm:$0xff]
        %v353 = vld [vmem:[%s225 + $0x290] sm:$0xff]
        %v354 = vld [vmem:[%s225 + $0x298] sm:$0xff]
        %v355 = vld [vmem:[%s225 + $0x2a0] sm:$0xff]
        %v356 = vld [vmem:[%s225 + $0x2a8] sm:$0xff]
        %v357 = vld [vmem:[%s225 + $0x2b0] sm:$0xff]
        %v358 = vld [vmem:[%s225 + $0x2b8] sm:$0xff]
        %v359 = vld [vmem:[%s225 + $0x2c0] sm:$0xff]
        %v360 = vld [vmem:[%s225 + $0x2c8] sm:$0xff]
        %v361 = vld [vmem:[%s225 + $0x2d0] sm:$0xff]
        %v362 = vld [vmem:[%s225 + $0x2d8] sm:$0xff]
        %v363 = vld [vmem:[%s225 + $0x2e0] sm:$0xff]
        %v364 = vld [vmem:[%s225 + $0x2e8] sm:$0xff]
        %v365 = vld [vmem:[%s225 + $0x2f0] sm:$0xff]
        %v366 = vld [vmem:[%s225 + $0x2f8] sm:$0xff]
        %v367 = vld [vmem:[%s225 + $0x300] sm:$0xff]
        %v368 = vld [vmem:[%s225 + $0x308] sm:$0xff]
        %v369 = vld [vmem:[%s225 + $0x310] sm:$0xff]
        %v370 = vld [vmem:[%s225 + $0x318] sm:$0xff]
        %v371 = vld [vmem:[%s225 + $0x320] sm:$0xff]
        %v372 = vld [vmem:[%s225 + $0x328] sm:$0xff]
        %v373 = vld [vmem:[%s225 + $0x330] sm:$0xff]
        %v374 = vld [vmem:[%s225 + $0x338] sm:$0xff]
        %v375 = vld [vmem:[%s225 + $0x340] sm:$0xff]
        %v376 = vld [vmem:[%s225 + $0x348] sm:$0xff]
        %v377 = vld [vmem:[%s225 + $0x350] sm:$0xff]
        %v378 = vld [vmem:[%s225 + $0x358] sm:$0xff]
        %v379 = vld [vmem:[%s225 + $0x360] sm:$0xff]
        %v380 = vld [vmem:[%s225 + $0x368] sm:$0xff]
        %v381 = vld [vmem:[%s225 + $0x370] sm:$0xff]
        %v382 = vld [vmem:[%s225 + $0x378] sm:$0xff]
        %v383 = vld [vmem:[%s225 + $0x380] sm:$0xff]
        %v384 = vld [vmem:[%s225 + $0x388] sm:$0xff]
        %v385 = vld [vmem:[%s225 + $0x390] sm:$0xff]
        %v386 = vld [vmem:[%s225 + $0x398] sm:$0xff]
        %v387 = vld [vmem:[%s225 + $0x3a0] sm:$0xff]
        %v388 = vld [vmem:[%s225 + $0x3a8] sm:$0xff]
        %v389 = vld [vmem:[%s225 + $0x3b0] sm:$0xff]
        %v390 = vld [vmem:[%s225 + $0x3b8] sm:$0xff]
        %v391 = vld [vmem:[%s225 + $0x3c0] sm:$0xff]
        %v392 = vld [vmem:[%s225 + $0x3c8] sm:$0xff]
        %v393 = vld [vmem:[%s225 + $0x3d0] sm:$0xff]
        %v394 = vld [vmem:[%s225 + $0x3d8] sm:$0xff]
        %v395 = vld [vmem:[%s225 + $0x3e0] sm:$0xff]
        %v396 = vld [vmem:[%s225 + $0x3e8] sm:$0xff]
        %v397 = vld [vmem:[%s225 + $0x3f0] sm:$0xff]
        %v398 = vld [vmem:[%s225 + $0x3f8] sm:$0xff]
        %v399 = vld [vmem:[%s235] sm:$0x3]
        %v401 = vperm.slane %v399, 0
        %v402 = vperm.slane %v399, 1
        %405 = vmatpush.msra.mxu0 %v301
        %406 = vmatpush.msra.mxu0 %v299
        %407 = vmatpush.msra.mxu0 %v297
        %408 = vmatpush.msra.mxu0 %v295
        %409 = vmatpush.msra.mxu0 %v293
        %410 = vmatpush.msra.mxu0 %v291
        %411 = vmatpush.msra.mxu0 %v289
        %412 = vmatpush.msra.mxu0 %v287
        %413 = vmatpush.msra.mxu0 %v285
        %414 = vmatpush.msra.mxu0 %v283
        %415 = vmatpush.msra.mxu0 %v281
        %416 = vmatpush.msra.mxu0 %v279
        %417 = vmatpush.msra.mxu0 %v277
        %418 = vmatpush.msra.mxu0 %v275
        %419 = vmatpush.msra.mxu0 %v273
        %420 = vmatpush.msra.mxu0 %v271
        %421 = vmatmul.f32.gmra.mxu0 %v267
        %v422 = vpop.f32.mrf.mxu0
        %v423 = vadd.f32 %v401, %v422
        %424 = vdwg.mxu0
        %425 = vmatpush.msra.mxu0 %v333
        %426 = vmatpush.msra.mxu0 %v331
        %427 = vmatpush.msra.mxu0 %v329
        %428 = vmatpush.msra.mxu0 %v327
        %429 = vmatpush.msra.mxu0 %v325
        %430 = vmatpush.msra.mxu0 %v323
        %431 = vmatpush.msra.mxu0 %v321
        %432 = vmatpush.msra.mxu0 %v319
        %433 = vmatpush.msra.mxu0 %v317
        %434 = vmatpush.msra.mxu0 %v315
        %435 = vmatpush.msra.mxu0 %v313
        %436 = vmatpush.msra.mxu0 %v311
        %437 = vmatpush.msra.mxu0 %v309
        %438 = vmatpush.msra.mxu0 %v307
        %439 = vmatpush.msra.mxu0 %v305
        %440 = vmatpush.msra.mxu0 %v303
        %441 = vmatmul.f32.gmra.mxu0 %v268
        %v442 = vpop.f32.mrf.mxu0
        %v443 = vadd.f32 %v423, %v442
        %444 = vdwg.mxu0
        %445 = vmatpush.msra.mxu0 %v365
        %446 = vmatpush.msra.mxu0 %v363
        %447 = vmatpush.msra.mxu0 %v361
        %448 = vmatpush.msra.mxu0 %v359
        %449 = vmatpush.msra.mxu0 %v357
        %450 = vmatpush.msra.mxu0 %v355
        %451 = vmatpush.msra.mxu0 %v353
        %452 = vmatpush.msra.mxu0 %v351
        %453 = vmatpush.msra.mxu0 %v349
        %454 = vmatpush.msra.mxu0 %v347
        %455 = vmatpush.msra.mxu0 %v345
        %456 = vmatpush.msra.mxu0 %v343
        %457 = vmatpush.msra.mxu0 %v341
        %458 = vmatpush.msra.mxu0 %v339
        %459 = vmatpush.msra.mxu0 %v337
        %460 = vmatpush.msra.mxu0 %v335
        %461 = vmatmul.f32.gmra.mxu0 %v269
        %v462 = vpop.f32.mrf.mxu0
        %v463 = vadd.f32 %v443, %v462
        %464 = vdwg.mxu0
        %465 = vmatpush.msra.mxu0 %v397
        %466 = vmatpush.msra.mxu0 %v395
        %467 = vmatpush.msra.mxu0 %v393
        %468 = vmatpush.msra.mxu0 %v391
        %469 = vmatpush.msra.mxu0 %v389
        %470 = vmatpush.msra.mxu0 %v387
        %471 = vmatpush.msra.mxu0 %v385
        %472 = vmatpush.msra.mxu0 %v383
        %473 = vmatpush.msra.mxu0 %v381
        %474 = vmatpush.msra.mxu0 %v379
        %475 = vmatpush.msra.mxu0 %v377
        %476 = vmatpush.msra.mxu0 %v375
        %477 = vmatpush.msra.mxu0 %v373
        %478 = vmatpush.msra.mxu0 %v371
        %479 = vmatpush.msra.mxu0 %v369
        %480 = vmatpush.msra.mxu0 %v367
        %481 = vmatmul.f32.gmra.mxu0 %v270
        %v482 = vpop.f32.mrf.mxu0
        %v483 = vadd.f32 %v463, %v482
        %484 = vdwg.mxu0
        %485 = vmatpush.msra.mxu0 %v302
        %486 = vmatpush.msra.mxu0 %v300
        %487 = vmatpush.msra.mxu0 %v298
        %488 = vmatpush.msra.mxu0 %v296
        %489 = vmatpush.msra.mxu0 %v294
        %490 = vmatpush.msra.mxu0 %v292
        %491 = vmatpush.msra.mxu0 %v290
        %492 = vmatpush.msra.mxu0 %v288
        %493 = vmatpush.msra.mxu0 %v286
        %494 = vmatpush.msra.mxu0 %v284
        %495 = vmatpush.msra.mxu0 %v282
        %496 = vmatpush.msra.mxu0 %v280
        %497 = vmatpush.msra.mxu0 %v278
        %498 = vmatpush.msra.mxu0 %v276
        %499 = vmatpush.msra.mxu0 %v274
        %500 = vmatpush.msra.mxu0 %v272
        %501 = vmatmul.f32.gmra.mxu0 %v267
        %v502 = vpop.f32.mrf.mxu0
        %v503 = vadd.f32 %v402, %v502
        %504 = vdwg.mxu0
        %505 = vmatpush.msra.mxu0 %v334
        %506 = vmatpush.msra.mxu0 %v332
        %507 = vmatpush.msra.mxu0 %v330
        %508 = vmatpush.msra.mxu0 %v328
        %509 = vmatpush.msra.mxu0 %v326
        %510 = vmatpush.msra.mxu0 %v324
        %511 = vmatpush.msra.mxu0 %v322
        %512 = vmatpush.msra.mxu0 %v320
        %513 = vmatpush.msra.mxu0 %v318
        %514 = vmatpush.msra.mxu0 %v316
        %515 = vmatpush.msra.mxu0 %v314
        %516 = vmatpush.msra.mxu0 %v312
        %517 = vmatpush.msra.mxu0 %v310
        %518 = vmatpush.msra.mxu0 %v308
        %519 = vmatpush.msra.mxu0 %v306
        %520 = vmatpush.msra.mxu0 %v304
        %521 = vmatmul.f32.gmra.mxu0 %v268
        %v522 = vpop.f32.mrf.mxu0
        %v523 = vadd.f32 %v503, %v522
        %524 = vdwg.mxu0
        %525 = vmatpush.msra.mxu0 %v366
        %526 = vmatpush.msra.mxu0 %v364
        %527 = vmatpush.msra.mxu0 %v362
        %528 = vmatpush.msra.mxu0 %v360
        %529 = vmatpush.msra.mxu0 %v358
        %530 = vmatpush.msra.mxu0 %v356
        %531 = vmatpush.msra.mxu0 %v354
        %532 = vmatpush.msra.mxu0 %v352
        %533 = vmatpush.msra.mxu0 %v350
        %534 = vmatpush.msra.mxu0 %v348
        %535 = vmatpush.msra.mxu0 %v346
        %536 = vmatpush.msra.mxu0 %v344
        %537 = vmatpush.msra.mxu0 %v342
        %538 = vmatpush.msra.mxu0 %v340
        %539 = vmatpush.msra.mxu0 %v338
        %540 = vmatpush.msra.mxu0 %v336
        %541 = vmatmul.f32.gmra.mxu0 %v269
        %v542 = vpop.f32.mrf.mxu0
        %v543 = vadd.f32 %v523, %v542
        %544 = vdwg.mxu0
        %545 = vmatpush.msra.mxu0 %v398
        %546 = vmatpush.msra.mxu0 %v396
        %547 = vmatpush.msra.mxu0 %v394
        %548 = vmatpush.msra.mxu0 %v392
        %549 = vmatpush.msra.mxu0 %v390
        %550 = vmatpush.msra.mxu0 %v388
        %551 = vmatpush.msra.mxu0 %v386
        %552 = vmatpush.msra.mxu0 %v384
        %553 = vmatpush.msra.mxu0 %v382
        %554 = vmatpush.msra.mxu0 %v380
        %555 = vmatpush.msra.mxu0 %v378
        %556 = vmatpush.msra.mxu0 %v376
        %557 = vmatpush.msra.mxu0 %v374
        %558 = vmatpush.msra.mxu0 %v372
        %559 = vmatpush.msra.mxu0 %v370
        %560 = vmatpush.msra.mxu0 %v368
        %561 = vmatmul.f32.gmra.mxu0 %v270
        %v562 = vpop.f32.mrf.mxu0
        %v563 = vadd.f32 %v543, %v562
        %564 = vdwg.mxu0
        %v565 = vmul.f32 %v483, 0.1
        %v566 = vmul.f32 %v563, 0.1
        %v567 = vmul.f32 %v565, 0.5
        %v568 = vmul.f32 %v566, 0.5
        %v569 = vmul.f32 %v565, 0.70710677
        %v570 = vmul.f32 %v566, 0.70710677
        %v571 = vmul.f32 %v569, %v569
        %v572 = vmin.f32 16.0, %v571
        %v573 = vmul.f32 %v572, 2.1237322e-06
        %v574 = vadd.f32 %v573, 0.00028619796
        %v575 = vmul.f32 %v572, %v574
        %v576 = vadd.f32 %v575, 0.0036580483
        %v577 = vmul.f32 %v572, %v576
        %v578 = vadd.f32 %v577, 0.05243302
        %v579 = vmul.f32 %v572, %v578
        %v580 = vadd.f32 %v579, 0.18741608
        %v581 = vmul.f32 %v572, %v580
        %v582 = vadd.f32 %v581, 1.1283791
        %v583 = vmul.f32 %v569, %v582
        %v584 = vmul.f32 %v572, 3.8918573e-05
        %v585 = vadd.f32 %v584, 0.001143296
        %v586 = vmul.f32 %v572, %v585
        %v587 = vadd.f32 %v586, 0.014752088
        %v588 = vmul.f32 %v572, %v587
        %v589 = vadd.f32 %v588, 0.112945676
        %v590 = vmul.f32 %v572, %v589
        %v591 = vadd.f32 %v590, 0.4994258
        %v592 = vmul.f32 %v572, %v591
        %v593 = vadd.f32 %v592, 1.0
        %v594 = vrcp.pop %v593
        %v595 = vmul.f32 %v593, %v594
        %v596 = vsub.f32 1.0, %v595
        %v597 = vmul.f32 %v594, %v596
        %v598 = vadd.f32 %v594, %v597
        %vm599 = vweird.f32 %v593
        %vm600 = vweird.f32 %v594
        %vm601 = vmor %vm599, %vm600
        %v602 = vsel %vm601, %v594, %v598
        %v603 = vand.u32 2147483647, %v593
        %vm604 = vcmp.eq.f32.partialorder %v603, 8.507059e+37
        %v605 = vand.u32 %v593, 2147483648
        %v606 = vor.u32 1.1754944e-38, %v605
        %v607 = vsel %vm604, %v606, %v602
        %v608 = vmul.f32 %v583, %v607
        %v609 = vmin.f32 %v608, 1.0
        %v610 = vmax.f32 %v609, -1.0
        %v611 = vmul.f32 %v570, %v570
        %v612 = vmin.f32 16.0, %v611
        %v613 = vmul.f32 %v612, 2.1237322e-06
        %v614 = vadd.f32 %v613, 0.00028619796
        %v615 = vmul.f32 %v612, %v614
        %v616 = vadd.f32 %v615, 0.0036580483
        %v617 = vmul.f32 %v612, %v616
        %v618 = vadd.f32 %v617, 0.05243302
        %v619 = vmul.f32 %v612, %v618
        %v620 = vadd.f32 %v619, 0.18741608
        %v621 = vmul.f32 %v612, %v620
        %v622 = vadd.f32 %v621, 1.1283791
        %v623 = vmul.f32 %v570, %v622
        %v624 = vmul.f32 %v612, 3.8918573e-05
        %v625 = vadd.f32 %v624, 0.001143296
        %v626 = vmul.f32 %v612, %v625
        %v627 = vadd.f32 %v626, 0.014752088
        %v628 = vmul.f32 %v612, %v627
        %v629 = vadd.f32 %v628, 0.112945676
        %v630 = vmul.f32 %v612, %v629
        %v631 = vadd.f32 %v630, 0.4994258
        %v632 = vmul.f32 %v612, %v631
        %v633 = vadd.f32 %v632, 1.0
        %v634 = vrcp.pop %v633
        %v635 = vmul.f32 %v633, %v634
        %v636 = vsub.f32 1.0, %v635
        %v637 = vmul.f32 %v634, %v636
        %v638 = vadd.f32 %v634, %v637
        %vm639 = vweird.f32 %v633
        %vm640 = vweird.f32 %v634
        %vm641 = vmor %vm639, %vm640
        %v642 = vsel %vm641, %v634, %v638
        %v643 = vand.u32 2147483647, %v633
        %vm644 = vcmp.eq.f32.partialorder %v643, 8.507059e+37
        %v645 = vand.u32 %v633, 2147483648
        %v646 = vor.u32 1.1754944e-38, %v645
        %v647 = vsel %vm644, %v646, %v642
        %v648 = vmul.f32 %v623, %v647
        %v649 = vmin.f32 %v648, 1.0
        %v650 = vmax.f32 %v649, -1.0
        %v651 = vadd.f32 %v610, 1.0
        %v652 = vadd.f32 %v650, 1.0
        %v653 = vmul.f32 %v567, %v651
        %v654 = vmul.f32 %v568, %v652
        %655 = vst [vmem:[%s263] sm:$0xff] %v653
        %656 = vst [vmem:[%s263 + $0x8] sm:$0xff] %v654
        %s657 = sand.u32 %s121, 1
        %s658 = scalar_lea.sflag [#allocation4], %s657
        %s659 = sand.u32 %s121, 1
        %s660 = smul.addr %s659, 16
        %s661 = scalar_lea.vmem [#allocation8], %s660
        // Predicated region
        $region45: #{tpu_custom_call.1} parent=31 // pred_check
          %p662 = pneg %p131
        $region46: #{tpu_custom_call.1} parent=31 // pred_check_branch
          %664 = sbr.rel (%p662) target = $region48
        $region47: #{tpu_custom_call.1} parent=31 // pred_region
          %s665 = smul.u32 2, %s26
          %667 = vsyncadd %s658, 0
          %s668 = smul.addr %s25, 8
          %s669 = sadd.s32 %s665, %s668
          %s670 = smul.addr %s669, 8
          %s671 = scalar_lea.hbm %s3, %s670
          %s673 = sshll.u32 %s661, 4
          %s674 = int_to_ptr.vmem [resolvable:$true] %s673
          %s675 = sshll.u32 %s671, 4
          %s676 = int_to_ptr.hbm [resolvable:$true] %s675
          %678 = dma.vmem_to_hbm [thread:$0]  %s674, 256, %s676, %s658
        $region48: #{tpu_custom_call.1} parent=31 // pred_fallthru
          _
      $region32: #{tpu_custom_call.1} parent=5 // pred_fallthru
        _
      %p679 = scmp.le.s32.totalorder 2, %s16
      // Predicated region
      $region49: #{tpu_custom_call.1} parent=5 // pred_check
        %p680 = pneg %p679
      $region50: #{tpu_custom_call.1} parent=5 // pred_check_branch
        %682 = sbr.rel (%p680) target = $region52
      $region51: #{tpu_custom_call.1} parent=5 // pred_region
        %s683 = ssub.s32 %s16, 2
        // Predicated region
        $region53: #{tpu_custom_call.1} parent=51 // pred_check
          %p684 = pneg %p137
        $region54: #{tpu_custom_call.1} parent=51 // pred_check_branch
          %686 = sbr.rel (%p684) target = $region56
        $region55: #{tpu_custom_call.1} parent=51 // pred_region
          %s687 = sand.u32 %s122, 1
          %s688 = scalar_lea.sflag [#allocation4], %s687
          %s689 = sand.u32 %s122, 1
          %s690 = smul.addr %s689, 16
          %s691 = scalar_lea.vmem [#allocation8], %s690
          %693 = dma.done %s688, 256
        $region56: #{tpu_custom_call.1} parent=51 // pred_fallthru
          _
      $region52: #{tpu_custom_call.1} parent=5 // pred_fallthru
        _
    $region6: #{tpu_custom_call.1} parent=1 // loop_footer
      %s20 = sadd.s32 1, %s16
    $region7: #{tpu_custom_call.1} parent=1 // loop_footer_branch
      %15 = sbr.rel target = $region3
    $region8: #{tpu_custom_call.1} parent=1 // loop_exit
      _
    %694 = vsyncpa [#allocation3], 1
    %s695 = scalar_lea.sflag [#allocation3], 1
    %696 = vsyncpa %s695, 1
    %697 = vsyncpa [#allocation6], 1
    %s698 = scalar_lea.sflag [#allocation6], 1
    %699 = vsyncpa %s698, 1
    %700 = vsyncpa [#allocation4], 1
    %s701 = scalar_lea.sflag [#allocation4], 1
    %702 = vsyncpa %s701, 1

</llo_original>
